<compile_context>
chip_gen: v5e
topology: v5e:2x2
jax: 0.10.0
libtpu: 0.0.40
codegen_flags: <defaults>
</compile_context>

<pallas_src>
import functools
import re

import jax
import jax.numpy as jnp
from jax.experimental import pallas as pl
from jax.experimental.pallas import tpu as pltpu


def _rmsnorm_kernel(x_ref, scale_ref, o_ref, *, epsilon):
    x = x_ref[...]
    xf = x.astype(jnp.float32)                                 # out = x.float()
    ms = jnp.mean(xf * xf, axis=-1, keepdims=True)             # mean(out^2, -1)
    normed = xf * jax.lax.rsqrt(ms + epsilon)                  # * rsqrt(ms + eps)
    normed = normed.astype(x.dtype)                            # out = out.type_as(x)
    out = normed.astype(jnp.float32) * scale_ref[...]          # * f32 scale (promotes)
    o_ref[...] = out.astype(o_ref.dtype)


def _tpu_generation():
    """Best-effort TPU generation (e.g. 5, 6, 7). 0 if unknown."""
    try:
        kind = jax.devices()[0].device_kind
        m = re.search(r"v(\d+)", kind)
        if m:
            return int(m.group(1))
    except Exception:
        pass
    return 0


def _vmem_capacity_bytes():
    """Best-effort physical VMEM size; conservative 64 MiB if unknown."""
    try:
        v = int(pltpu.get_tpu_info().vmem_capacity_bytes)
        if v > 0:
            return v
    except Exception:
        pass
    gen = _tpu_generation()
    if gen >= 7:
        return 64 << 20
    if gen in (5, 6):
        return 128 << 20
    return 64 << 20  # conservative default


def _choose_block_rows(rows, embed_dim, in_bytes, out_bytes, vmem_bytes):
    """Pick a row tile so (in + out) bytes per tile hits a gen-aware target.

    ~16 MiB per tile on 128 MiB-VMEM chips (v5e/v6e), ~8 MiB on 64 MiB chips
    (v7x). Rounded down to a multiple of 32 rows (covers f32 / bf16 / 8-bit
    sublane packing), capped at 4096 rows, floored at 8, never larger than
    `rows`. Also capped so the row grid has >= 4 steps when rows allow, so
    both v7x TensorCores get work and the pipeline can overlap.
    """
    target_tile_bytes = (16 << 20) if vmem_bytes >= (96 << 20) else (8 << 20)
    per_row = embed_dim * (in_bytes + out_bytes)
    br = max(1, target_tile_bytes // per_row)
    if br >= 32:
        br = (br // 32) * 32
    br = min(br, 4096)
    br = max(br, 8)
    # Guarantee a multi-step grid (>= 4 steps) when rows are large enough.
    min_steps = 4
    if rows > 8 * min_steps:
        cap = pl.cdiv(rows, min_steps)
        cap = max(8, (cap // 8) * 8)  # keep sublane-aligned
        br = min(br, cap)
    br = min(br, rows)
    return int(br)


def rmsnorm(x, scale, epsilon=1e-10, block_rows=None, out_dtype=None):
    """x: (..., embed_dim), scale: (embed_dim,).

    Default output dtype follows PyTorch promotion (float32). Pass
    out_dtype=x.dtype (opt-in) to skip the f32 output write and halve HBM
    write traffic for bf16 inputs.
    """
    orig_shape = x.shape
    embed_dim = orig_shape[-1]
    rows = 1
    for d in orig_shape[:-1]:
        rows *= d
    x2d = x.reshape(rows, embed_dim)
    scale2d = scale.reshape(1, embed_dim).astype(jnp.float32)

    # Output dtype: PyTorch promotion of (x.dtype * float32 scale) by default.
    if out_dtype is None:
        out_dtype = jnp.promote_types(x.dtype, jnp.float32)
    in_bytes = jnp.dtype(x.dtype).itemsize
    out_bytes = jnp.dtype(out_dtype).itemsize

    vmem_bytes = _vmem_capacity_bytes()
    gen = _tpu_generation()

    if block_rows is None:
        block_rows = _choose_block_rows(rows, embed_dim, in_bytes, out_bytes,
                                        vmem_bytes)
    block_rows = int(min(block_rows, rows))

    grid = (pl.cdiv(rows, block_rows),)  # partial last block handled by Pallas

    # Input pipelining depth: try triple-buffering the input on v7x where
    # per-step DMAs are very short; fall back cleanly if unsupported.
    in_buffers = 3 if gen >= 7 else 2
    x_spec = None
    if in_buffers != 2 and hasattr(pl, "Buffered"):
        try:
            x_spec = pl.BlockSpec((block_rows, embed_dim), lambda i: (i, 0),
                                  pipeline_mode=pl.Buffered(in_buffers))
        except (TypeError, AttributeError):
            x_spec = None
    if x_spec is None:
        in_buffers = 2
        x_spec = pl.BlockSpec((block_rows, embed_dim), lambda i: (i, 0))

    # VMEM budget: multi-buffered in/out tiles + the f32 intermediates the
    # body materializes (xf, xf*xf / normed ~ 2x f32 tiles) + scale + headroom.
    tile_in = block_rows * embed_dim * in_bytes
    tile_out = block_rows * embed_dim * out_bytes
    interm = 2 * block_rows * embed_dim * 4
    vmem_needed = (in_buffers * tile_in + 2 * tile_out + interm
                   + 2 * embed_dim * 4 + (2 << 20))
    vmem_cap = (48 << 20) if vmem_bytes < (96 << 20) else (80 << 20)
    vmem_limit = int(min(max(vmem_needed, 16 << 20), vmem_cap))

    cost = pl.CostEstimate(
        flops=4 * rows * embed_dim,          # square, reduce-add, rsqrt-mul, scale-mul
        transcendentals=rows,                # one rsqrt per row
        bytes_accessed=rows * embed_dim * (in_bytes + out_bytes) + embed_dim * 4,
    )

    out2d = pl.pallas_call(
        functools.partial(_rmsnorm_kernel, epsilon=epsilon),
        out_shape=jax.ShapeDtypeStruct((rows, embed_dim), out_dtype),
        grid_spec=pltpu.PrefetchScalarGridSpec(
            num_scalar_prefetch=0,
            grid=grid,
            in_specs=[
                x_spec,
                pl.BlockSpec((1, embed_dim), lambda i: (0, 0)),
            ],
            out_specs=pl.BlockSpec((block_rows, embed_dim), lambda i: (i, 0)),
        ),
        compiler_params=pltpu.CompilerParams(
            dimension_semantics=("parallel",),   # v7x shards rows across 2 TCs
            vmem_limit_bytes=vmem_limit,
        ),
        cost_estimate=cost,
    )(x2d, scale2d)

    return out2d.reshape(orig_shape)


def _reference(x, scale, epsilon):
    xf = x.astype(jnp.float32)
    out = xf * jax.lax.rsqrt(jnp.mean(xf * xf, axis=-1, keepdims=True) + epsilon)
    out = out.astype(x.dtype)
    return out.astype(jnp.float32) * scale.astype(jnp.float32)


if __name__ == "__main__":
    epsilon = 1e-10
    key = jax.random.PRNGKey(0)

    # Primary test: batch=2, seq=8, embed_dim=128, float32.
    batch, seq, embed_dim = 2, 8, 128
    k0, k1 = jax.random.split(key)
    x = jax.random.normal(k0, (batch, seq, embed_dim), dtype=jnp.float32)
    scale = jnp.ones((embed_dim,), dtype=jnp.float32)  # nn.Parameter(torch.ones(embed_dim))

    out = rmsnorm(x, scale, epsilon=epsilon)
    out = jax.block_until_ready(out)
    ref = _reference(x, scale, epsilon)
    assert out.shape == x.shape and out.dtype == jnp.float32
    assert jnp.allclose(out, ref, atol=1e-5, rtol=1e-5), "f32 mismatch vs reference"

    # Secondary test: bf16 input with rows not divisible by block_rows
    # (exercises the cdiv / partial-block path and the x.dtype quantize step).
    b2, s2, d2 = 3, 5, 256
    xb = jax.random.normal(k1, (b2, s2, d2), dtype=jnp.float32).astype(jnp.bfloat16)
    scale2 = jnp.ones((d2,), dtype=jnp.float32)
    out_b = rmsnorm(xb, scale2, epsilon=epsilon, block_rows=8)
    out_b = jax.block_until_ready(out_b)
    ref_b = _reference(xb, scale2, epsilon)
    assert out_b.dtype == jnp.float32
    assert jnp.allclose(out_b, ref_b, atol=1e-2, rtol=1e-2), "bf16 mismatch vs reference"

    # Tertiary test: opt-in bf16 output path (deviates from PyTorch promotion
    # on purpose; halves write traffic for bandwidth-bound callers).
    out_c = rmsnorm(xb, scale2, epsilon=epsilon, out_dtype=jnp.bfloat16)
    out_c = jax.block_until_ready(out_c)
    assert out_c.dtype == jnp.bfloat16
    assert jnp.allclose(out_c.astype(jnp.float32), ref_b, atol=3e-2, rtol=3e-2), \
        "bf16-out mismatch vs reference"

    print("KERNEL_OK")
</pallas_src>

<mosaic_0001>
module attributes {stable_mosaic.version = 11 : i64} {
  func.func @_rmsnorm_kernel(%arg0: i32, %arg1: memref<16x128xf32, #tpu.memory_space<vmem>>, %arg2: memref<1x128xf32, #tpu.memory_space<vmem>>, %arg3: memref<16x128xf32, #tpu.memory_space<vmem>>) attributes {dimension_semantics = [#tpu.dimension_semantics<parallel>], iteration_bounds = array<i64: 1>, scalar_prefetch = 0 : i64, scratch_operands = 0 : i64, tpu.core_type = #tpu.core_type<tc>, window_params = [{transform_indices = @transform_0, window_bounds = array<i64: 16, 128>}, {pipeline_mode = #tpu.pipeline_mode<synchronous>, transform_indices = @transform_1, window_bounds = array<i64: 1, 128>}, {transform_indices = @transform_2, window_bounds = array<i64: 16, 128>}]} {
    %c0 = arith.constant 0 : index
    %c0_0 = arith.constant 0 : index
    %0 = vector.load %arg1[%c0, %c0_0] : memref<16x128xf32, #tpu.memory_space<vmem>>, vector<16x128xf32>
    %1 = arith.mulf %0, %0 : vector<16x128xf32>
    %cst = arith.constant dense<0.000000e+00> : vector<16xf32>
    %2 = vector.multi_reduction <add>, %1, %cst [1] : vector<16x128xf32> to vector<16xf32>
    %3 = vector.shape_cast %2 : vector<16xf32> to vector<16x1xf32>
    %cst_1 = arith.constant 1.280000e+02 : f32
    %4 = vector.broadcast %cst_1 : f32 to vector<16x1xf32>
    %5 = arith.divf %3, %4 : vector<16x1xf32>
    %cst_2 = arith.constant 1.000000e-10 : f32
    %6 = vector.broadcast %cst_2 : f32 to vector<16x1xf32>
    %7 = arith.addf %5, %6 : vector<16x1xf32>
    %8 = math.rsqrt %7 : vector<16x1xf32>
    %9 = vector.broadcast %8 : vector<16x1xf32> to vector<16x128xf32>
    %10 = arith.mulf %0, %9 : vector<16x128xf32>
    %c0_3 = arith.constant 0 : index
    %c0_4 = arith.constant 0 : index
    %11 = vector.load %arg2[%c0_3, %c0_4] : memref<1x128xf32, #tpu.memory_space<vmem>>, vector<1x128xf32>
    %12 = vector.broadcast %11 : vector<1x128xf32> to vector<16x128xf32>
    %13 = arith.mulf %10, %12 : vector<16x128xf32>
    %c0_5 = arith.constant 0 : index
    %c0_6 = arith.constant 0 : index
    %14 = vector.load %arg3[%c0_5, %c0_6] : memref<16x128xf32, #tpu.memory_space<vmem>>, vector<16x128xf32>
    tpu.vector_store %arg3[%c0_5, %c0_6], %13 {strides = array<i32>} : memref<16x128xf32, #tpu.memory_space<vmem>>, vector<16x128xf32>,
    return
  }
  func.func @transform_0(%arg0: i32) -> (i32, i32) {
    %c0_i32 = arith.constant 0 : i32
    %c0_i32_0 = arith.constant 0 : i32
    return %arg0, %c0_i32 : i32, i32
  }
  func.func @transform_1(%arg0: i32) -> (i32, i32) {
    %c0_i32 = arith.constant 0 : i32
    %c0_i32_0 = arith.constant 0 : i32
    %c0_i32_1 = arith.constant 0 : i32
    return %c0_i32, %c0_i32_0 : i32, i32
  }
  func.func @transform_2(%arg0: i32) -> (i32, i32) {
    %c0_i32 = arith.constant 0 : i32
    %c0_i32_0 = arith.constant 0 : i32
    return %arg0, %c0_i32 : i32, i32
  }
}

</mosaic_0001>

<llo_original>
// kernel: tpu_custom_call.1
$region0: #{tpu_custom_call.1}
  #allocation0 [shape = 'u32[]', space=smem, size = 0x4, offset = 0x4, fixed_abs, tag = 'smem constant byte address 0x4 - core index']
  #allocation1 [shape = 'u32[72,128]{1,0:T(1,128)}', space=vmem, size = 0x9000, scoped, tag = 'internal scratch']
  %s0 = inlined_call_operand.hbm [shape: f32[16,128], index: 0, kind: input, shape index: {}]
  %s1 = inlined_call_operand.hbm [shape: f32[1,128], index: 1, kind: input, shape index: {}]
  %s2 = inlined_call_operand.hbm [shape: f32[16,128], index: 2, kind: output, shape index: {}]
  %s3 = sld [smem:[#allocation0]]
  $region26: #{tpu_custom_call.1} parent=0
    _
  %s5 = ssub.s32 1, %s3
  %s6 = scalar_select 0, %s5, %s3
  $region1: #{tpu_custom_call.1} parent=0
    #allocation2 [shape = 'u8[8192]{0}', space=vmem, size = 0x2000, scoped, tag = 'input window, operand 0, single buffered']
    #allocation3 [shape = 's32[1]{0}', space=sflag, size = 0x4, scoped, tag = 'scoped memory for tpu_custom_call.1']
    #allocation4 [shape = 's32[1]{0}', space=sflag, size = 0x4, scoped, tag = 'scoped memory for tpu_custom_call.1']
    #allocation5 [shape = 'u8[512]{0}', space=vmem, size = 0x400, scoped, tag = 'input window, operand 1, single buffered']
    #allocation6 [shape = 's32[1]{0}', space=sflag, size = 0x4, scoped, tag = 'scoped memory for tpu_custom_call.1']
    #allocation7 [shape = 'u8[8192]{0}', space=vmem, size = 0x2000, scoped, tag = 'output window, operand 0, single buffered']
    %7 = vsyncpa [#allocation3], 0
    %8 = vsyncpa [#allocation6], 0
    %9 = vsyncpa [#allocation4], 0
    // Predicated region
    $region2: #{tpu_custom_call.1} parent=1 // pred_check
      _
    $region3: #{tpu_custom_call.1} parent=1 // pred_check_branch
      %11 = sbr.rel (0) target = $region5
    $region4: #{tpu_custom_call.1} parent=1 // pred_region
      %13 = vsyncadd [#allocation3], 0
      %s14 = sshll.u32 %s0, 4
      %s15 = int_to_ptr.hbm [resolvable:$true] %s14
      %s16 = sshll.u32 [#allocation2], 4
      %s17 = int_to_ptr.vmem [resolvable:$true] %s16
      %22 = dma.hbm_to_vmem [thread:$0]  %s15, 256, %s17, [#allocation3], 128, 128, 8
    $region5: #{tpu_custom_call.1} parent=1 // pred_fallthru
      _
    // Predicated region
    $region6: #{tpu_custom_call.1} parent=1 // pred_check
      _
    $region7: #{tpu_custom_call.1} parent=1 // pred_check_branch
      %24 = sbr.rel (0) target = $region9
    $region8: #{tpu_custom_call.1} parent=1 // pred_region
      %26 = vsyncadd [#allocation6], 0
      %s28 = sshll.u32 %s1, 4
      %s29 = int_to_ptr.hbm [resolvable:$true] %s28
      %s30 = sshll.u32 [#allocation5], 4
      %s31 = int_to_ptr.vmem [resolvable:$true] %s30
      %33 = dma.hbm_to_vmem [thread:$0]  %s29, 16, %s31, [#allocation6]
    $region9: #{tpu_custom_call.1} parent=1 // pred_fallthru
      _
    // Predicated region
    $region10: #{tpu_custom_call.1} parent=1 // pred_check
      _
    $region11: #{tpu_custom_call.1} parent=1 // pred_check_branch
      %35 = sbr.rel (0) target = $region13
    $region12: #{tpu_custom_call.1} parent=1 // pred_region
      %37 = dma.done [#allocation3], 256
    $region13: #{tpu_custom_call.1} parent=1 // pred_fallthru
      _
    // Predicated region
    $region14: #{tpu_custom_call.1} parent=1 // pred_check
      _
    $region15: #{tpu_custom_call.1} parent=1 // pred_check_branch
      %39 = sbr.rel (0) target = $region17
    $region16: #{tpu_custom_call.1} parent=1 // pred_region
      %41 = dma.done [#allocation6], 16
    $region17: #{tpu_custom_call.1} parent=1 // pred_fallthru
      _
    %v42 = vld [vmem:[#allocation2] sm:$0xff]
    %v43 = vld [vmem:[#allocation2 + $0x8] sm:$0xff]
    %v44 = vmul.f32 %v42, %v42
    %v45 = vmul.f32 %v43, %v43
    %46 = vadd.xlane.f32.xlu0 %v44
    %v47 = vpop.xlane.xlu0 %46
    %48 = vadd.xlane.f32.xlu0 %v45
    %v49 = vpop.xlane.xlu0 %48
    %v50 = vrcp.pop 128.0
    %v51 = vmul.f32 128.0, %v50
    %v52 = vsub.f32 1.0, %v51
    %v53 = vmul.f32 %v50, %v52
    %v54 = vadd.f32 %v50, %v53
    %vm55 = vweird.f32 %v50
    %v56 = vsel %vm55, %v50, %v54
    %v57 = vmul.f32 %v47, %v56
    %v58 = vmul.f32 %v49, %v56
    %v59 = vadd.f32 %v57, 1e-10
    %v60 = vadd.f32 %v58, 1e-10
    %v61 = vrsqrt.pop %v59
    %v62 = vmul.f32 %v61, %v59
    %v63 = vmul.f32 %v62, %v61
    %v64 = vmul.f32 0.5, %v63
    %v65 = vsub.f32 1.5, %v64
    %v66 = vmul.f32 %v61, %v65
    %vm67 = vweird.f32 %v59
    %vm68 = vweird.f32 %v61
    %vm69 = vmor %vm67, %vm68
    %v70 = vsel %vm69, %v61, %v66
    %v71 = vrsqrt.pop %v60
    %v72 = vmul.f32 %v71, %v60
    %v73 = vmul.f32 %v72, %v71
    %v74 = vmul.f32 0.5, %v73
    %v75 = vsub.f32 1.5, %v74
    %v76 = vmul.f32 %v71, %v75
    %vm77 = vweird.f32 %v60
    %vm78 = vweird.f32 %v71
    %vm79 = vmor %vm77, %vm78
    %v80 = vsel %vm79, %v71, %v76
    %v81 = vmul.f32 %v42, %v70
    %v82 = vmul.f32 %v43, %v80
    %v83 = vld [vmem:[#allocation5] sm:$0x1]
    %v85 = vperm.slane %v83, 0
    %v87 = vmul.f32 %v81, %v85
    %v88 = vmul.f32 %v82, %v85
    %89 = vst [vmem:[#allocation7] sm:$0xff] %v87
    %90 = vst [vmem:[#allocation7 + $0x8] sm:$0xff] %v88
    // Predicated region
    $region18: #{tpu_custom_call.1} parent=1 // pred_check
      _
    $region19: #{tpu_custom_call.1} parent=1 // pred_check_branch
      %92 = sbr.rel (0) target = $region21
    $region20: #{tpu_custom_call.1} parent=1 // pred_region
      %94 = vsyncadd [#allocation4], 0
      %s95 = sshll.u32 [#allocation7], 4
      %s96 = int_to_ptr.vmem [resolvable:$true] %s95
      %s97 = sshll.u32 %s2, 4
      %s98 = int_to_ptr.hbm [resolvable:$true] %s97
      %103 = dma.vmem_to_hbm [thread:$0]  %s96, 256, %s98, [#allocation4], 128, 128, 8
    $region21: #{tpu_custom_call.1} parent=1 // pred_fallthru
      _
    // Predicated region
    $region22: #{tpu_custom_call.1} parent=1 // pred_check
      _
    $region23: #{tpu_custom_call.1} parent=1 // pred_check_branch
      %105 = sbr.rel (0) target = $region25
    $region24: #{tpu_custom_call.1} parent=1 // pred_region
      %107 = dma.done [#allocation4], 256
    $region25: #{tpu_custom_call.1} parent=1 // pred_fallthru
      _
    %108 = vsyncpa [#allocation3], 1
    %109 = vsyncpa [#allocation6], 1
    %110 = vsyncpa [#allocation4], 1

</llo_original>
